<compile_context>
chip_gen: v7x
topology: tpu7x:2x2x1
jax: 0.10.0
libtpu: 0.0.40
codegen_flags: <defaults>
</compile_context>

<pallas_src>
import functools

import jax
import jax.numpy as jnp
import numpy as np
from jax import lax
from jax.experimental import pallas as pl
from jax.experimental.pallas import tpu as pltpu

BN_EPS = 1e-5
LANES = 128


def _round_up(v, m):
    return (v + m - 1) // m * m


def _conv_tile(x_ref, w_ref, *, wp, tile):
    """3x3 conv on one flattened padded-image slab via a single MXU matmul.

    x_ref: (Ci, SLAB) bf16  per-image zero-padded flattened input (front halo Wp+1)
    w_ref: (Co, 9*Ci) bf16  taps stacked into the contraction dim ((dy*3+dx)*Ci+ci)
    returns (Co, tile) f32
    """
    taps = []
    for dy in range(3):
        # One slab load per kernel row; dx shifts are cheap lane sub-slices.
        slab = x_ref[:, dy * wp:dy * wp + tile + 2]           # (Ci, tile+2)
        for dx in range(3):
            taps.append(slab[:, dx:dx + tile])                # (Ci, tile)
    patch = jnp.concatenate(taps, axis=0)                     # (9*Ci, tile)
    return jnp.dot(w_ref[...], patch, preferred_element_type=jnp.float32)


def _stats_kernel(x_ref, w_ref, mask_ref, stats_ref, *, wp, tile):
    """Pass 1: conv tile + masked per-channel sum / sumsq, accumulated over grid."""
    acc = _conv_tile(x_ref, w_ref, wp=wp, tile=tile)          # (Co, tile) f32
    am = acc * mask_ref[...].astype(jnp.float32)              # masked conv output
    # Masked sum and sum-of-squares in one MXU mat-vec (keeps the XLU free).
    tile_stats = jnp.dot(jnp.concatenate([am, am * acc], axis=0),
                         jnp.ones((tile, 1), jnp.float32),
                         preferred_element_type=jnp.float32)  # (2*Co, 1)

    @pl.when(pl.program_id(0) == 0)
    def _():
        stats_ref[...] = jnp.zeros_like(stats_ref)

    stats_ref[...] += tile_stats


def _apply_kernel(x_ref, w_ref, scale_ref, shift_ref, o_ref, *, wp, tile):
    """Pass 2: recompute conv tile, apply folded BN (scale/shift) + ReLU, store bf16."""
    acc = _conv_tile(x_ref, w_ref, wp=wp, tile=tile)
    o_ref[...] = jnp.maximum(acc * scale_ref[...] + shift_ref[...],
                             0.0).astype(o_ref.dtype)


def _vmem_limit(ci, co, slab, tile):
    work = (2 * ci * slab * 2      # double-buffered bf16 input slabs
            + 2 * co * tile * 2    # double-buffered bf16 output tiles
            + co * 9 * ci * 2      # weight slab
            + 9 * ci * tile * 2    # stacked im2col patch
            + 3 * co * tile * 4    # f32 conv acc + epilogue temporaries
            + 2 * tile * 4)        # mask / ones column
    return int(min(max(2 * work, 4 << 20), 32 << 20))


def conv_bn_relu(x_nchw, w, b, gamma, beta, out_dtype=jnp.bfloat16):
    """Fused Conv3x3(pad=1, stride=1) + BatchNorm2d(train) + ReLU.

    x_nchw: (N, C_in, H, W); w: (C_out, C_in, 3, 3); b/gamma/beta: (C_out,).
    Returns (N, C_out, H, W) in `out_dtype` (bf16 by default for downstream blocks).
    """
    # Conv bias is exactly cancelled by the batch-mean subtraction of
    # training-mode BN, so it is dropped from the fused kernel.
    del b
    N, C_in, H, W = x_nchw.shape
    C_out = w.shape[0]
    Hp, Wp = H + 2, W + 2
    M = N * H * W                                   # BN population (valid positions)

    # Channel padding to sublane multiples (no-op at real HiDDeN widths).
    Ci = _round_up(max(C_in, 8), 8)
    Co = _round_up(max(C_out, 8), 8)

    TILE = _round_up(Hp * Wp, LANES)                # lane-dense output width / image
    SLAB = _round_up(TILE + 2 * Wp + 2, LANES)      # per-image input slab (with halo)
    front = Wp + 1
    back = SLAB - Hp * Wp - front

    # ---- layout plumbing (pure JAX, no transposes): per-image padded slabs ----
    xp = jnp.pad(x_nchw, ((0, 0), (0, Ci - C_in), (1, 1), (1, 1)))   # (N, Ci, Hp, Wp)
    xs = jnp.pad(xp.reshape(N, Ci, Hp * Wp), ((0, 0), (0, 0), (front, back)))
    xs = xs.astype(jnp.bfloat16)                                     # (N, Ci, SLAB)

    # Taps stacked into the contraction dim: index = (dy*3+dx)*Ci + ci.
    w_pad = jnp.pad(w, ((0, Co - C_out), (0, Ci - C_in), (0, 0), (0, 0)))
    w_flat = jnp.transpose(w_pad, (0, 2, 3, 1)).reshape(Co, 9 * Ci)
    w_flat = w_flat.astype(jnp.bfloat16)

    # Valid-output mask (shared across images; host-built, static shapes).
    q = np.arange(TILE)
    valid = ((q < Hp * Wp)
             & (q % Wp >= 1) & (q % Wp <= W)
             & (q // Wp >= 1) & (q // Wp <= H))
    mask = jnp.asarray(valid.reshape(1, TILE), dtype=jnp.bfloat16)

    vmem_bytes = _vmem_limit(Ci, Co, SLAB, TILE)

    # ---- pass 1: per-channel masked sum / sumsq accumulated across images ----
    stats = pl.pallas_call(
        functools.partial(_stats_kernel, wp=Wp, tile=TILE),
        grid=(N,),
        in_specs=[pl.BlockSpec((None, Ci, SLAB), lambda n: (n, 0, 0)),
                  pl.BlockSpec((Co, 9 * Ci), lambda n: (0, 0)),
                  pl.BlockSpec((1, TILE), lambda n: (0, 0))],
        out_specs=pl.BlockSpec((2 * Co, 1), lambda n: (0, 0)),
        out_shape=jax.ShapeDtypeStruct((2 * Co, 1), jnp.float32),
        compiler_params=pltpu.CompilerParams(
            dimension_semantics=("arbitrary",),        # resident stats accumulator
            vmem_limit_bytes=vmem_bytes),
    )(xs, w_flat, mask)

    # ---- tiny JAX step: fold BN normalize + affine into per-channel FMA ----
    inv_m = 1.0 / M
    mean = stats[:Co] * inv_m
    var = jnp.maximum(stats[Co:] * inv_m - mean * mean, 0.0)
    g = jnp.pad(gamma.astype(jnp.float32), (0, Co - C_out),
                constant_values=1.0).reshape(Co, 1)
    be = jnp.pad(beta.astype(jnp.float32), (0, Co - C_out)).reshape(Co, 1)
    scale = g * lax.rsqrt(var + BN_EPS)
    shift = be - mean * scale

    # ---- pass 2: recompute conv tile, normalize + affine + ReLU, bf16 store ----
    out = pl.pallas_call(
        functools.partial(_apply_kernel, wp=Wp, tile=TILE),
        grid=(N,),
        in_specs=[pl.BlockSpec((None, Ci, SLAB), lambda n: (n, 0, 0)),
                  pl.BlockSpec((Co, 9 * Ci), lambda n: (0, 0)),
                  pl.BlockSpec((Co, 1), lambda n: (0, 0)),
                  pl.BlockSpec((Co, 1), lambda n: (0, 0))],
        out_specs=pl.BlockSpec((None, Co, TILE), lambda n: (n, 0, 0)),
        out_shape=jax.ShapeDtypeStruct((N, Co, TILE), out_dtype),
        compiler_params=pltpu.CompilerParams(
            dimension_semantics=("parallel",),          # images split across TCs
            vmem_limit_bytes=vmem_bytes),
    )(xs, w_flat, scale, shift)

    # ---- back to NCHW (no transpose needed with per-image slabs) ----
    out = out[:, :C_out, :Hp * Wp].reshape(N, C_out, Hp, Wp)[:, :, 1:H + 1, 1:W + 1]
    return out


def _reference(x_nchw, w, b, gamma, beta):
    """Pure-JAX reference (conv + training-mode BN + ReLU) for validation."""
    y = lax.conv_general_dilated(
        x_nchw.astype(jnp.float32), w.astype(jnp.float32),
        window_strides=(1, 1), padding=((1, 1), (1, 1)),
        dimension_numbers=("NCHW", "OIHW", "NCHW"),
        precision=lax.Precision.HIGHEST,
    ) + b.reshape(1, -1, 1, 1)
    mean = jnp.mean(y, axis=(0, 2, 3), keepdims=True)
    var = jnp.mean((y - mean) ** 2, axis=(0, 2, 3), keepdims=True)
    y_hat = (y - mean) * lax.rsqrt(var + BN_EPS)
    return jnp.maximum(y_hat * gamma.reshape(1, -1, 1, 1)
                       + beta.reshape(1, -1, 1, 1), 0.0)


if __name__ == "__main__":
    # Small shapes consistent with the module: N=2, C_in=4, H=W=16, C_out=8.
    N, C_in, H, W, C_out = 2, 4, 16, 16, 8

    key = jax.random.PRNGKey(0)
    kx, kw, kb = jax.random.split(key, 3)
    x = jax.random.normal(kx, (N, C_in, H, W), dtype=jnp.float32)

    # Deterministic init (Conv2d(C_in, C_out, 3) + BatchNorm2d(C_out) defaults).
    fan_in = C_in * 3 * 3
    bound = 1.0 / np.sqrt(fan_in)
    w = jax.random.uniform(kw, (C_out, C_in, 3, 3), jnp.float32, -bound, bound)
    b = jax.random.uniform(kb, (C_out,), jnp.float32, -bound, bound)
    gamma = jnp.ones((C_out,), jnp.float32)
    beta = jnp.zeros((C_out,), jnp.float32)

    fwd = jax.jit(conv_bn_relu)
    out = jax.block_until_ready(fwd(x, w, b, gamma, beta))
    assert out.shape == (N, C_out, H, W)
    out_f32 = np.asarray(out.astype(jnp.float32))

    # Tight check: reference fed the same bf16-quantized operands the MXU sees
    # (remaining slack covers the bf16 output store + f32 accumulation order).
    xq = x.astype(jnp.bfloat16).astype(jnp.float32)
    wq = w.astype(jnp.bfloat16).astype(jnp.float32)
    ref_q = np.asarray(jax.block_until_ready(_reference(xq, wq, b, gamma, beta)))
    np.testing.assert_allclose(out_f32, ref_q, atol=2.5e-2, rtol=2.5e-2)

    # Loose check vs. exact f32 math (slack covers bf16 operand quantization).
    ref = np.asarray(jax.block_until_ready(_reference(x, w, b, gamma, beta)))
    np.testing.assert_allclose(out_f32, ref, atol=6e-2, rtol=6e-2)
    print("KERNEL_OK")
</pallas_src>

<mosaic_0001>
module attributes {stable_mosaic.version = 11 : i64} {
  func.func @_stats_kernel(%arg0: i32, %arg1: memref<1x8x512xbf16, #tpu.memory_space<vmem>>, %arg2: memref<8x72xbf16, #tpu.memory_space<vmem>>, %arg3: memref<1x384xbf16, #tpu.memory_space<vmem>>, %arg4: memref<16x1xf32, #tpu.memory_space<vmem>>) attributes {dimension_semantics = [#tpu.dimension_semantics<arbitrary>], iteration_bounds = array<i64: 2>, scalar_prefetch = 0 : i64, scratch_operands = 0 : i64, tpu.core_type = #tpu.core_type<tc>, window_params = [{transform_indices = @transform_0, window_bounds = array<i64: 1, 8, 512>}, {pipeline_mode = #tpu.pipeline_mode<synchronous>, transform_indices = @transform_1, window_bounds = array<i64: 8, 72>}, {pipeline_mode = #tpu.pipeline_mode<synchronous>, transform_indices = @transform_2, window_bounds = array<i64: 1, 384>}, {pipeline_mode = #tpu.pipeline_mode<synchronous>, transform_indices = @transform_3, window_bounds = array<i64: 16, 1>}]} {
    %c0 = arith.constant 0 : index
    %c0_0 = arith.constant 0 : index
    %c0_1 = arith.constant 0 : index
    %0 = vector.load %arg1[%c0, %c0_0, %c0_1] : memref<1x8x512xbf16, #tpu.memory_space<vmem>>, vector<1x8x386xbf16>
    %1 = vector.shape_cast %0 : vector<1x8x386xbf16> to vector<8x386xbf16>
    %2 = vector.extract_strided_slice %1 {offsets = [0, 0], sizes = [8, 384], strides = [1, 1]} : vector<8x386xbf16> to vector<8x384xbf16>
    %3 = vector.extract_strided_slice %1 {offsets = [0, 1], sizes = [8, 384], strides = [1, 1]} : vector<8x386xbf16> to vector<8x384xbf16>
    %4 = vector.extract_strided_slice %1 {offsets = [0, 2], sizes = [8, 384], strides = [1, 1]} : vector<8x386xbf16> to vector<8x384xbf16>
    %c0_2 = arith.constant 0 : index
    %c0_3 = arith.constant 0 : index
    %c18 = arith.constant 18 : index
    %5 = vector.load %arg1[%c0_2, %c0_3, %c18] : memref<1x8x512xbf16, #tpu.memory_space<vmem>>, vector<1x8x386xbf16>
    %6 = vector.shape_cast %5 : vector<1x8x386xbf16> to vector<8x386xbf16>
    %7 = vector.extract_strided_slice %6 {offsets = [0, 0], sizes = [8, 384], strides = [1, 1]} : vector<8x386xbf16> to vector<8x384xbf16>
    %8 = vector.extract_strided_slice %6 {offsets = [0, 1], sizes = [8, 384], strides = [1, 1]} : vector<8x386xbf16> to vector<8x384xbf16>
    %9 = vector.extract_strided_slice %6 {offsets = [0, 2], sizes = [8, 384], strides = [1, 1]} : vector<8x386xbf16> to vector<8x384xbf16>
    %c0_4 = arith.constant 0 : index
    %c0_5 = arith.constant 0 : index
    %c36 = arith.constant 36 : index
    %10 = vector.load %arg1[%c0_4, %c0_5, %c36] : memref<1x8x512xbf16, #tpu.memory_space<vmem>>, vector<1x8x386xbf16>
    %11 = vector.shape_cast %10 : vector<1x8x386xbf16> to vector<8x386xbf16>
    %12 = vector.extract_strided_slice %11 {offsets = [0, 0], sizes = [8, 384], strides = [1, 1]} : vector<8x386xbf16> to vector<8x384xbf16>
    %13 = vector.extract_strided_slice %11 {offsets = [0, 1], sizes = [8, 384], strides = [1, 1]} : vector<8x386xbf16> to vector<8x384xbf16>
    %14 = vector.extract_strided_slice %11 {offsets = [0, 2], sizes = [8, 384], strides = [1, 1]} : vector<8x386xbf16> to vector<8x384xbf16>
    %15 = tpu.concatenate %2, %3, %4, %7, %8, %9, %12, %13, %14 in 0 : vector<8x384xbf16>, vector<8x384xbf16>, vector<8x384xbf16>, vector<8x384xbf16>, vector<8x384xbf16>, vector<8x384xbf16>, vector<8x384xbf16>, vector<8x384xbf16>, vector<8x384xbf16> -> vector<72x384xbf16>
    %c0_6 = arith.constant 0 : index
    %c0_7 = arith.constant 0 : index
    %16 = vector.load %arg2[%c0_6, %c0_7] : memref<8x72xbf16, #tpu.memory_space<vmem>>, vector<8x72xbf16>
    %cst = arith.constant dense<0.000000e+00> : vector<8x384xf32>
    %17 = tpu.matmul %16, %15, %cst {dimension_numbers = #tpu.dot_dimension_numbers<[1], [0], [0], [1], [0, 0, 1, 1], [], []>} : vector<8x72xbf16>, vector<72x384xbf16>, vector<8x384xf32> -> vector<8x384xf32>
    %c0_8 = arith.constant 0 : index
    %c0_9 = arith.constant 0 : index
    %18 = vector.load %arg3[%c0_8, %c0_9] : memref<1x384xbf16, #tpu.memory_space<vmem>>, vector<1x384xbf16>
    %19 = arith.extf %18 : vector<1x384xbf16> to vector<1x384xf32>
    %20 = vector.broadcast %19 : vector<1x384xf32> to vector<8x384xf32>
    %21 = arith.mulf %17, %20 : vector<8x384xf32>
    %22 = arith.mulf %21, %17 : vector<8x384xf32>
    %23 = tpu.concatenate %21, %22 in 0 : vector<8x384xf32>, vector<8x384xf32> -> vector<16x384xf32>
    %cst_10 = arith.constant 1.000000e+00 : f32
    %24 = vector.broadcast %cst_10 : f32 to vector<384x1xf32>
    %cst_11 = arith.constant dense<0.000000e+00> : vector<16x1xf32>
    %25 = tpu.matmul %23, %24, %cst_11 {dimension_numbers = #tpu.dot_dimension_numbers<[1], [0], [0], [1], [0, 0, 1, 1], [], []>} : vector<16x384xf32>, vector<384x1xf32>, vector<16x1xf32> -> vector<16x1xf32>
    %c0_i32 = arith.constant 0 : i32
    %26 = arith.cmpi eq, %arg0, %c0_i32 : i32
    %27 = arith.extui %26 : i1 to i32
    %c0_i32_12 = arith.constant 0 : i32
    %28 = arith.cmpi ne, %27, %c0_i32_12 : i32
    scf.if %28 {
      %cst_17 = arith.constant 0.000000e+00 : f32
      %32 = vector.broadcast %cst_17 : f32 to vector<16x1xf32>
      %c0_18 = arith.constant 0 : index
      %c0_19 = arith.constant 0 : index
      %33 = vector.load %arg4[%c0_18, %c0_19] : memref<16x1xf32, #tpu.memory_space<vmem>>, vector<16x1xf32>
      tpu.vector_store %arg4[%c0_18, %c0_19], %32 {strides = array<i32>} : memref<16x1xf32, #tpu.memory_space<vmem>>, vector<16x1xf32>,
    } else {
    }
    %c0_13 = arith.constant 0 : index
    %c0_14 = arith.constant 0 : index
    %29 = vector.load %arg4[%c0_13, %c0_14] : memref<16x1xf32, #tpu.memory_space<vmem>>, vector<16x1xf32>
    %30 = arith.addf %29, %25 : vector<16x1xf32>
    %c0_15 = arith.constant 0 : index
    %c0_16 = arith.constant 0 : index
    %31 = vector.load %arg4[%c0_15, %c0_16] : memref<16x1xf32, #tpu.memory_space<vmem>>, vector<16x1xf32>
    tpu.vector_store %arg4[%c0_15, %c0_16], %30 {strides = array<i32>} : memref<16x1xf32, #tpu.memory_space<vmem>>, vector<16x1xf32>,
    return
  }
  func.func @transform_0(%arg0: i32) -> (i32, i32, i32) {
    %c0_i32 = arith.constant 0 : i32
    %c0_i32_0 = arith.constant 0 : i32
    %c0_i32_1 = arith.constant 0 : i32
    return %arg0, %c0_i32, %c0_i32_0 : i32, i32, i32
  }
  func.func @transform_1(%arg0: i32) -> (i32, i32) {
    %c0_i32 = arith.constant 0 : i32
    %c0_i32_0 = arith.constant 0 : i32
    %c0_i32_1 = arith.constant 0 : i32
    return %c0_i32, %c0_i32_0 : i32, i32
  }
  func.func @transform_2(%arg0: i32) -> (i32, i32) {
    %c0_i32 = arith.constant 0 : i32
    %c0_i32_0 = arith.constant 0 : i32
    %c0_i32_1 = arith.constant 0 : i32
    return %c0_i32, %c0_i32_0 : i32, i32
  }
  func.func @transform_3(%arg0: i32) -> (i32, i32) {
    %c0_i32 = arith.constant 0 : i32
    %c0_i32_0 = arith.constant 0 : i32
    %c0_i32_1 = arith.constant 0 : i32
    return %c0_i32, %c0_i32_0 : i32, i32
  }
}

module attributes {stable_mosaic.version = 11 : i64} {
  func.func @_apply_kernel(%arg0: i32, %arg1: memref<1x8x512xbf16, #tpu.memory_space<vmem>>, %arg2: memref<8x72xbf16, #tpu.memory_space<vmem>>, %arg3: memref<8x1xf32, #tpu.memory_space<vmem>>, %arg4: memref<8x1xf32, #tpu.memory_space<vmem>>, %arg5: memref<1x8x384xbf16, #tpu.memory_space<vmem>>) attributes {dimension_semantics = [#tpu.dimension_semantics<parallel>], iteration_bounds = array<i64: 2>, scalar_prefetch = 0 : i64, scratch_operands = 0 : i64, tpu.core_type = #tpu.core_type<tc>, window_params = [{transform_indices = @transform_0, window_bounds = array<i64: 1, 8, 512>}, {pipeline_mode = #tpu.pipeline_mode<synchronous>, transform_indices = @transform_1, window_bounds = array<i64: 8, 72>}, {pipeline_mode = #tpu.pipeline_mode<synchronous>, transform_indices = @transform_2, window_bounds = array<i64: 8, 1>}, {pipeline_mode = #tpu.pipeline_mode<synchronous>, transform_indices = @transform_3, window_bounds = array<i64: 8, 1>}, {transform_indices = @transform_4, window_bounds = array<i64: 1, 8, 384>}]} {
    %c0 = arith.constant 0 : index
    %c0_0 = arith.constant 0 : index
    %c0_1 = arith.constant 0 : index
    %0 = vector.load %arg1[%c0, %c0_0, %c0_1] : memref<1x8x512xbf16, #tpu.memory_space<vmem>>, vector<1x8x386xbf16>
    %1 = vector.shape_cast %0 : vector<1x8x386xbf16> to vector<8x386xbf16>
    %2 = vector.extract_strided_slice %1 {offsets = [0, 0], sizes = [8, 384], strides = [1, 1]} : vector<8x386xbf16> to vector<8x384xbf16>
    %3 = vector.extract_strided_slice %1 {offsets = [0, 1], sizes = [8, 384], strides = [1, 1]} : vector<8x386xbf16> to vector<8x384xbf16>
    %4 = vector.extract_strided_slice %1 {offsets = [0, 2], sizes = [8, 384], strides = [1, 1]} : vector<8x386xbf16> to vector<8x384xbf16>
    %c0_2 = arith.constant 0 : index
    %c0_3 = arith.constant 0 : index
    %c18 = arith.constant 18 : index
    %5 = vector.load %arg1[%c0_2, %c0_3, %c18] : memref<1x8x512xbf16, #tpu.memory_space<vmem>>, vector<1x8x386xbf16>
    %6 = vector.shape_cast %5 : vector<1x8x386xbf16> to vector<8x386xbf16>
    %7 = vector.extract_strided_slice %6 {offsets = [0, 0], sizes = [8, 384], strides = [1, 1]} : vector<8x386xbf16> to vector<8x384xbf16>
    %8 = vector.extract_strided_slice %6 {offsets = [0, 1], sizes = [8, 384], strides = [1, 1]} : vector<8x386xbf16> to vector<8x384xbf16>
    %9 = vector.extract_strided_slice %6 {offsets = [0, 2], sizes = [8, 384], strides = [1, 1]} : vector<8x386xbf16> to vector<8x384xbf16>
    %c0_4 = arith.constant 0 : index
    %c0_5 = arith.constant 0 : index
    %c36 = arith.constant 36 : index
    %10 = vector.load %arg1[%c0_4, %c0_5, %c36] : memref<1x8x512xbf16, #tpu.memory_space<vmem>>, vector<1x8x386xbf16>
    %11 = vector.shape_cast %10 : vector<1x8x386xbf16> to vector<8x386xbf16>
    %12 = vector.extract_strided_slice %11 {offsets = [0, 0], sizes = [8, 384], strides = [1, 1]} : vector<8x386xbf16> to vector<8x384xbf16>
    %13 = vector.extract_strided_slice %11 {offsets = [0, 1], sizes = [8, 384], strides = [1, 1]} : vector<8x386xbf16> to vector<8x384xbf16>
    %14 = vector.extract_strided_slice %11 {offsets = [0, 2], sizes = [8, 384], strides = [1, 1]} : vector<8x386xbf16> to vector<8x384xbf16>
    %15 = tpu.concatenate %2, %3, %4, %7, %8, %9, %12, %13, %14 in 0 : vector<8x384xbf16>, vector<8x384xbf16>, vector<8x384xbf16>, vector<8x384xbf16>, vector<8x384xbf16>, vector<8x384xbf16>, vector<8x384xbf16>, vector<8x384xbf16>, vector<8x384xbf16> -> vector<72x384xbf16>
    %c0_6 = arith.constant 0 : index
    %c0_7 = arith.constant 0 : index
    %16 = vector.load %arg2[%c0_6, %c0_7] : memref<8x72xbf16, #tpu.memory_space<vmem>>, vector<8x72xbf16>
    %cst = arith.constant dense<0.000000e+00> : vector<8x384xf32>
    %17 = tpu.matmul %16, %15, %cst {dimension_numbers = #tpu.dot_dimension_numbers<[1], [0], [0], [1], [0, 0, 1, 1], [], []>} : vector<8x72xbf16>, vector<72x384xbf16>, vector<8x384xf32> -> vector<8x384xf32>
    %c0_8 = arith.constant 0 : index
    %c0_9 = arith.constant 0 : index
    %18 = vector.load %arg3[%c0_8, %c0_9] : memref<8x1xf32, #tpu.memory_space<vmem>>, vector<8x1xf32>
    %19 = vector.broadcast %18 : vector<8x1xf32> to vector<8x384xf32>
    %20 = arith.mulf %17, %19 : vector<8x384xf32>
    %c0_10 = arith.constant 0 : index
    %c0_11 = arith.constant 0 : index
    %21 = vector.load %arg4[%c0_10, %c0_11] : memref<8x1xf32, #tpu.memory_space<vmem>>, vector<8x1xf32>
    %22 = vector.broadcast %21 : vector<8x1xf32> to vector<8x384xf32>
    %23 = arith.addf %20, %22 : vector<8x384xf32>
    %cst_12 = arith.constant 0.000000e+00 : f32
    %24 = vector.broadcast %cst_12 : f32 to vector<8x384xf32>
    %25 = arith.maximumf %23, %24 : vector<8x384xf32>
    %26 = arith.truncf %25 : vector<8x384xf32> to vector<8x384xbf16>
    %c0_13 = arith.constant 0 : index
    %c0_14 = arith.constant 0 : index
    %c0_15 = arith.constant 0 : index
    %27 = vector.load %arg5[%c0_13, %c0_14, %c0_15] : memref<1x8x384xbf16, #tpu.memory_space<vmem>>, vector<1x8x384xbf16>
    %28 = vector.shape_cast %27 : vector<1x8x384xbf16> to vector<8x384xbf16>
    %29 = vector.shape_cast %26 : vector<8x384xbf16> to vector<1x8x384xbf16>
    tpu.vector_store %arg5[%c0_13, %c0_14, %c0_15], %29 {strides = array<i32>} : memref<1x8x384xbf16, #tpu.memory_space<vmem>>, vector<1x8x384xbf16>,
    return
  }
  func.func @transform_0(%arg0: i32) -> (i32, i32, i32) {
    %c0_i32 = arith.constant 0 : i32
    %c0_i32_0 = arith.constant 0 : i32
    %c0_i32_1 = arith.constant 0 : i32
    return %arg0, %c0_i32, %c0_i32_0 : i32, i32, i32
  }
  func.func @transform_1(%arg0: i32) -> (i32, i32) {
    %c0_i32 = arith.constant 0 : i32
    %c0_i32_0 = arith.constant 0 : i32
    %c0_i32_1 = arith.constant 0 : i32
    return %c0_i32, %c0_i32_0 : i32, i32
  }
  func.func @transform_2(%arg0: i32) -> (i32, i32) {
    %c0_i32 = arith.constant 0 : i32
    %c0_i32_0 = arith.constant 0 : i32
    %c0_i32_1 = arith.constant 0 : i32
    return %c0_i32, %c0_i32_0 : i32, i32
  }
  func.func @transform_3(%arg0: i32) -> (i32, i32) {
    %c0_i32 = arith.constant 0 : i32
    %c0_i32_0 = arith.constant 0 : i32
    %c0_i32_1 = arith.constant 0 : i32
    return %c0_i32, %c0_i32_0 : i32, i32
  }
  func.func @transform_4(%arg0: i32) -> (i32, i32, i32) {
    %c0_i32 = arith.constant 0 : i32
    %c0_i32_0 = arith.constant 0 : i32
    %c0_i32_1 = arith.constant 0 : i32
    return %arg0, %c0_i32, %c0_i32_0 : i32, i32, i32
  }
}

</mosaic_0001>

<llo_original>
// kernel: conv_bn_relu.3
$region0: #{conv_bn_relu.3}
  #allocation0 [shape = 'u32[]', space=smem, size = 0x4, offset = 0x4, fixed_abs, tag = 'smem constant byte address 0x4 - core index']
  #allocation1 [shape = 'u32[144,128]{1,0:T(1,128)}', space=vmem, size = 0x12000, scoped, tag = 'internal scratch']
  %s0 = inlined_call_operand.vmem [shape: bf16[2,8,512], index: 0, kind: input, shape index: {}]
  %s1 = inlined_call_operand.vmem [shape: bf16[8,72], index: 1, kind: input, shape index: {}]
  %s2 = inlined_call_operand.vmem [shape: f32[8,1], index: 2, kind: input, shape index: {}]
  %s3 = inlined_call_operand.vmem [shape: f32[8,1], index: 3, kind: input, shape index: {}]
  %s4 = inlined_call_operand.vmem [shape: bf16[2,8,384], index: 4, kind: output, shape index: {}]
  %s5 = sld [smem:[#allocation0]]
  $region49: #{conv_bn_relu.3} parent=0
    _
  %s7 = ssub.s32 1, %s5
  %s8 = scalar_select 0, %s7, %s5
  loop: start=0, step=1, limit=4
  $region2: #{conv_bn_relu.3} parent=0 // loop_pre_header
    _
  $region3: #{conv_bn_relu.3} parent=0 // loop_header
    %s10 = sphi 0, %s14
    %p11 = scmp.ge.s32.totalorder %s10, 4
    %s20 = sphi 0, %s22
    %s23 = sphi 0, %s20
    %s24 = sphi 0, %s23
    %s40 = sphi 0, %s24
    %s44 = sphi 0, %s44
    %s46 = sphi 0, %s44
    %s47 = sphi 0, %s46
    %s61 = sphi 0, %s47
    %s65 = sphi 0, %s65
    %s67 = sphi 0, %s65
    %s68 = sphi 0, %s67
    %s82 = sphi 0, %s68
    %s86 = sphi 0, %s86
    %s88 = sphi 0, %s86
    %s89 = sphi 0, %s88
    %s103 = sphi 0, %s89
    %s109 = sphi 0, %s111
    %s112 = sphi 0, %s109
    %s113 = sphi 0, %s112
    %s129 = sphi 0, %s113
  $region4: #{conv_bn_relu.3} parent=0 // loop_header_branch
    %13 = sbr.rel (%p11) target = $region8
  $region5: #{conv_bn_relu.3} parent=0 // loop_body
    %s15 = ssub.s32 %s10, 1
    %s16 = ssub.s32 %s10, 2
    %s17 = sadd.s32 %s10, 1
    %s18 = ssub.s32 %s10, %s17
    %p19 = scmp.eq.s32.totalorder %s18, 0
    %s21 = sadd.s32 %s20, 1
    %s22 = scalar_select %p19, %s20, %s21
    %p25 = pneg %p19
    %p26 = scmp.eq.s32.totalorder %s10, 1
    %p27 = por %p25, %p26
    %p28 = scmp.ne.s32.totalorder %s20, %s23
    %p29 = scmp.eq.s32.totalorder %s10, 0
    %p30 = por %p28, %p29
    %p31 = scmp.ne.s32.totalorder %s20, %s23
    %p32 = scmp.eq.s32.totalorder %s15, 1
    %p33 = por %p31, %p32
    %p34 = scmp.ne.s32.totalorder %s23, %s24
    %p35 = scmp.eq.s32.totalorder %s15, 0
    %p36 = por %p34, %p35
    %p37 = scmp.ne.s32.totalorder %s23, %s24
    %p38 = scmp.eq.s32.totalorder %s16, 1
    %p39 = por %p37, %p38
    %p41 = scmp.ne.s32.totalorder %s24, %s40
    %p42 = scmp.eq.s32.totalorder %s16, 0
    %p43 = por %p41, %p42
    %s45 = sadd.s32 %s44, 1
    %p48 = scmp.eq.s32.totalorder %s10, 1
    %p49 = scmp.ne.s32.totalorder %s44, %s46
    %p50 = scmp.eq.s32.totalorder %s10, 0
    %p51 = por %p49, %p50
    %p52 = scmp.ne.s32.totalorder %s44, %s46
    %p53 = scmp.eq.s32.totalorder %s15, 1
    %p54 = por %p52, %p53
    %p55 = scmp.ne.s32.totalorder %s46, %s47
    %p56 = scmp.eq.s32.totalorder %s15, 0
    %p57 = por %p55, %p56
    %p58 = scmp.ne.s32.totalorder %s46, %s47
    %p59 = scmp.eq.s32.totalorder %s16, 1
    %p60 = por %p58, %p59
    %p62 = scmp.ne.s32.totalorder %s47, %s61
    %p63 = scmp.eq.s32.totalorder %s16, 0
    %p64 = por %p62, %p63
    %s66 = sadd.s32 %s65, 1
    %p69 = scmp.eq.s32.totalorder %s10, 1
    %p70 = scmp.ne.s32.totalorder %s65, %s67
    %p71 = scmp.eq.s32.totalorder %s10, 0
    %p72 = por %p70, %p71
    %p73 = scmp.ne.s32.totalorder %s65, %s67
    %p74 = scmp.eq.s32.totalorder %s15, 1
    %p75 = por %p73, %p74
    %p76 = scmp.ne.s32.totalorder %s67, %s68
    %p77 = scmp.eq.s32.totalorder %s15, 0
    %p78 = por %p76, %p77
    %p79 = scmp.ne.s32.totalorder %s67, %s68
    %p80 = scmp.eq.s32.totalorder %s16, 1
    %p81 = por %p79, %p80
    %p83 = scmp.ne.s32.totalorder %s68, %s82
    %p84 = scmp.eq.s32.totalorder %s16, 0
    %p85 = por %p83, %p84
    %s87 = sadd.s32 %s86, 1
    %p90 = scmp.eq.s32.totalorder %s10, 1
    %p91 = scmp.ne.s32.totalorder %s86, %s88
    %p92 = scmp.eq.s32.totalorder %s10, 0
    %p93 = por %p91, %p92
    %p94 = scmp.ne.s32.totalorder %s86, %s88
    %p95 = scmp.eq.s32.totalorder %s15, 1
    %p96 = por %p94, %p95
    %p97 = scmp.ne.s32.totalorder %s88, %s89
    %p98 = scmp.eq.s32.totalorder %s15, 0
    %p99 = por %p97, %p98
    %p100 = scmp.ne.s32.totalorder %s88, %s89
    %p101 = scmp.eq.s32.totalorder %s16, 1
    %p102 = por %p100, %p101
    %p104 = scmp.ne.s32.totalorder %s89, %s103
    %p105 = scmp.eq.s32.totalorder %s16, 0
    %p106 = por %p104, %p105
    %s107 = ssub.s32 %s10, %s17
    %p108 = scmp.eq.s32.totalorder %s107, 0
    %s110 = sadd.s32 %s109, 1
    %s111 = scalar_select %p108, %s109, %s110
    %p114 = pneg %p108
    %p115 = scmp.eq.s32.totalorder %s10, 1
    %p116 = por %p114, %p115
    %p117 = scmp.ne.s32.totalorder %s109, %s112
    %p118 = scmp.eq.s32.totalorder %s10, 0
    %p119 = por %p117, %p118
    %p120 = scmp.ne.s32.totalorder %s109, %s112
    %p121 = scmp.eq.s32.totalorder %s15, 1
    %p122 = por %p120, %p121
    %p123 = scmp.ne.s32.totalorder %s112, %s113
    %p124 = scmp.eq.s32.totalorder %s15, 0
    %p125 = por %p123, %p124
    %p126 = scmp.ne.s32.totalorder %s112, %s113
    %p127 = scmp.eq.s32.totalorder %s16, 1
    %p128 = por %p126, %p127
    %p130 = scmp.ne.s32.totalorder %s113, %s129
    %p131 = scmp.eq.s32.totalorder %s16, 0
    %p132 = por %p130, %p131
    %p133 = scmp.le.s32.totalorder 1, %s10
    %p134 = scmp.lt.s32.totalorder %s10, 3
    %p135 = pnand %p133, %p134
    %p136 = pneg %p135
    // Predicated region
    $region9: #{conv_bn_relu.3} parent=5 // pred_check
      _
    $region10: #{conv_bn_relu.3} parent=5 // pred_check_branch
      %138 = sbr.rel (%p135) target = $region12
    $region11: #{conv_bn_relu.3} parent=5 // pred_region
      %s139 = ssub.s32 %s10, 1
      // Predicated region
      $region13: #{conv_bn_relu.3} parent=11 // pred_check
        %p140 = pneg %p57
      $region14: #{conv_bn_relu.3} parent=11 // pred_check_branch
        %142 = sbr.rel (%p140) target = $region16
      $region15: #{conv_bn_relu.3} parent=11 // pred_region
        _
      $region16: #{conv_bn_relu.3} parent=11 // pred_fallthru
        _
      // Predicated region
      $region17: #{conv_bn_relu.3} parent=11 // pred_check
        %p143 = pneg %p78
      $region18: #{conv_bn_relu.3} parent=11 // pred_check_branch
        %145 = sbr.rel (%p143) target = $region20
      $region19: #{conv_bn_relu.3} parent=11 // pred_region
        _
      $region20: #{conv_bn_relu.3} parent=11 // pred_fallthru
        _
      // Predicated region
      $region21: #{conv_bn_relu.3} parent=11 // pred_check
        %p146 = pneg %p99
      $region22: #{conv_bn_relu.3} parent=11 // pred_check_branch
        %148 = sbr.rel (%p146) target = $region24
      $region23: #{conv_bn_relu.3} parent=11 // pred_region
        _
      $region24: #{conv_bn_relu.3} parent=11 // pred_fallthru
        _
    $region12: #{conv_bn_relu.3} parent=5 // pred_fallthru
      _
    %p149 = scmp.lt.s32.totalorder %s10, 2
    // Predicated region
    $region25: #{conv_bn_relu.3} parent=5 // pred_check
      %p150 = pneg %p149
    $region26: #{conv_bn_relu.3} parent=5 // pred_check_branch
      %152 = sbr.rel (%p150) target = $region28
    $region27: #{conv_bn_relu.3} parent=5 // pred_region
      // Predicated region
      $region29: #{conv_bn_relu.3} parent=27 // pred_check
        %p153 = pneg %p30
      $region30: #{conv_bn_relu.3} parent=27 // pred_check_branch
        %155 = sbr.rel (%p153) target = $region32
      $region31: #{conv_bn_relu.3} parent=27 // pred_region
        %p156 = scmp.lt.s32.totalorder %s10, 1
        %s157 = scalar_select %p156, %s10, 1
        %s158 = smul.addr %s157, 4
        %s159 = smul.addr %s158, 4
        %s160 = scalar_lea.vmem %s0, %s159
      $region32: #{conv_bn_relu.3} parent=27 // pred_fallthru
        _
    $region28: #{conv_bn_relu.3} parent=5 // pred_fallthru
      _
    %p161 = scmp.le.s32.totalorder 1, %s10
    %p162 = scmp.lt.s32.totalorder %s10, 3
    %p163 = pnand %p161, %p162
    %p164 = pneg %p163
    // Predicated region
    $region33: #{conv_bn_relu.3} parent=5 // pred_check
      _
    $region34: #{conv_bn_relu.3} parent=5 // pred_check_branch
      %166 = sbr.rel (%p163) target = $region36
    $region35: #{conv_bn_relu.3} parent=5 // pred_region
      %s167 = ssub.s32 %s10, 1
      %p168 = scmp.lt.s32.totalorder %s15, 1
      %s169 = scalar_select %p168, %s15, 1
      %s170 = smul.addr %s169, 4
      %s171 = smul.addr %s170, 4
      %s172 = scalar_lea.vmem %s0, %s171
      %p173 = pneg %p36
      %p174 = pneg %p33
      %p175 = pneg %p57
      %p176 = pneg %p54
      %p177 = pneg %p78
      %p178 = pneg %p75
      %p179 = pneg %p99
      %p180 = pneg %p96
      %p181 = pneg %p125
      %p182 = pneg %p122
      %p183 = scmp.lt.s32.totalorder %s15, 1
      %s184 = scalar_select %p183, %s15, 1
      %s185 = smul.addr %s184, 3
      %s186 = smul.addr %s185, 4
      %s187 = scalar_lea.vmem %s4, %s186
      %p188 = scmp.lt.s32.totalorder %s15, 1
      %s189 = scalar_select %p188, %s15, 1
      %s190 = smul.addr %s189, 4
      %s191 = smul.addr %s190, 4
      %s192 = scalar_lea.vmem %s0, %s191
      %p193 = scmp.lt.s32.totalorder %s15, 1
      %s194 = scalar_select %p193, %s15, 1
      %s195 = smul.addr %s194, 3
      %s196 = smul.addr %s195, 4
      %s197 = scalar_lea.vmem %s4, %s196
      %v199 = vld [vmem:[%s192] sm:$0xff]
      %v200 = vld [vmem:[%s192 + $0x8] sm:$0xff]
      %v203 = vunpack.c.l.b16 %v199
      %v204 = vunpack.c.h.b16 %v199
      %v205 = vunpack.c.l.b16 %v200
      %v206 = vpack.c.b16 %v203, %v203
      %v207 = vpack.c.b16 %v204, %v204
      %v208 = vpack.c.b16 %v205, %v205
      %v209 = vunpack.c.h.b16 %v200
      %v210 = vpack.c.b16 %v209, %v209
      %211 = vrot.lane.b32.xlu0 %v206, 127
      %v212 = vpop.permute.xlu0 %211
      %213 = vrot.lane.b32.xlu0 %v207, 127
      %v214 = vpop.permute.xlu0 %213
      %215 = vrot.lane.b32.xlu0 %v208, 127
      %v216 = vpop.permute.xlu0 %215
      %217 = vrot.lane.b32.xlu0 %v210, 127
      %v218 = vpop.permute.xlu0 %217
      %vm219 = vcmask 1039360
      %v220 = vsel %vm219, %v212, %v214
      %v221 = vsel %vm219, %v214, %v216
      %v222 = vsel %vm219, %v216, %v218
      %223 = vrot.lane.b32.xlu0 %v206, 126
      %v224 = vpop.permute.xlu0 %223
      %225 = vrot.lane.b32.xlu0 %v207, 126
      %v226 = vpop.permute.xlu0 %225
      %227 = vrot.lane.b32.xlu0 %v208, 126
      %v228 = vpop.permute.xlu0 %227
      %229 = vrot.lane.b32.xlu0 %v210, 126
      %v230 = vpop.permute.xlu0 %229
      %vm231 = vcmask 1031168
      %v232 = vsel %vm231, %v224, %v226
      %v233 = vsel %vm231, %v226, %v228
      %v234 = vsel %vm231, %v228, %v230
      %235 = vrot.lane.b32.xlu0 %v206, 110
      %v236 = vpop.permute.xlu0 %235
      %237 = vrot.lane.b32.xlu0 %v207, 110
      %v238 = vpop.permute.xlu0 %237
      %239 = vrot.lane.b32.xlu0 %v208, 110
      %v240 = vpop.permute.xlu0 %239
      %241 = vrot.lane.b32.xlu0 %v210, 110
      %v242 = vpop.permute.xlu0 %241
      %vm243 = vcmask 900096
      %v244 = vsel %vm243, %v236, %v238
      %v245 = vsel %vm243, %v238, %v240
      %v246 = vsel %vm243, %v240, %v242
      %247 = vrot.lane.b32.xlu0 %v206, 109
      %v248 = vpop.permute.xlu0 %247
      %249 = vrot.lane.b32.xlu0 %v207, 109
      %v250 = vpop.permute.xlu0 %249
      %251 = vrot.lane.b32.xlu0 %v208, 109
      %v252 = vpop.permute.xlu0 %251
      %253 = vrot.lane.b32.xlu0 %v210, 109
      %v254 = vpop.permute.xlu0 %253
      %vm255 = vcmask 891904
      %v256 = vsel %vm255, %v248, %v250
      %v257 = vsel %vm255, %v250, %v252
      %v258 = vsel %vm255, %v252, %v254
      %259 = vrot.lane.b32.xlu0 %v206, 108
      %v260 = vpop.permute.xlu0 %259
      %261 = vrot.lane.b32.xlu0 %v207, 108
      %v262 = vpop.permute.xlu0 %261
      %263 = vrot.lane.b32.xlu0 %v208, 108
      %v264 = vpop.permute.xlu0 %263
      %265 = vrot.lane.b32.xlu0 %v210, 108
      %v266 = vpop.permute.xlu0 %265
      %vm267 = vcmask 883712
      %v268 = vsel %vm267, %v260, %v262
      %v269 = vsel %vm267, %v262, %v264
      %v270 = vsel %vm267, %v264, %v266
      %271 = vrot.lane.b32.xlu0 %v206, 92
      %v272 = vpop.permute.xlu0 %271
      %273 = vrot.lane.b32.xlu0 %v207, 92
      %v274 = vpop.permute.xlu0 %273
      %275 = vrot.lane.b32.xlu0 %v208, 92
      %v276 = vpop.permute.xlu0 %275
      %277 = vrot.lane.b32.xlu0 %v210, 92
      %v278 = vpop.permute.xlu0 %277
      %vm279 = vcmask 752640
      %v280 = vsel %vm279, %v272, %v274
      %v281 = vsel %vm279, %v274, %v276
      %v282 = vsel %vm279, %v276, %v278
      %283 = vrot.lane.b32.xlu0 %v206, 91
      %v284 = vpop.permute.xlu0 %283
      %285 = vrot.lane.b32.xlu0 %v207, 91
      %v286 = vpop.permute.xlu0 %285
      %287 = vrot.lane.b32.xlu0 %v208, 91
      %v288 = vpop.permute.xlu0 %287
      %289 = vrot.lane.b32.xlu0 %v210, 91
      %v290 = vpop.permute.xlu0 %289
      %vm291 = vcmask 744448
      %v292 = vsel %vm291, %v284, %v286
      %v293 = vsel %vm291, %v286, %v288
      %v294 = vsel %vm291, %v288, %v290
      %295 = vrot.lane.b32.xlu0 %v206, 90
      %v296 = vpop.permute.xlu0 %295
      %297 = vrot.lane.b32.xlu0 %v207, 90
      %v298 = vpop.permute.xlu0 %297
      %299 = vrot.lane.b32.xlu0 %v208, 90
      %v300 = vpop.permute.xlu0 %299
      %301 = vrot.lane.b32.xlu0 %v210, 90
      %v302 = vpop.permute.xlu0 %301
      %vm303 = vcmask 736256
      %v304 = vsel %vm303, %v296, %v298
      %v305 = vsel %vm303, %v298, %v300
      %v306 = vsel %vm303, %v300, %v302
      %vm307 = vcmask 1043456
      %v310 = vsel %vm307, %v206, %v220
      %v314 = vsel %vm307, %v207, %v221
      %v318 = vsel %vm307, %v208, %v222
      %v322 = vsel %vm307, %v232, %v244
      %v326 = vsel %vm307, %v233, %v245
      %v330 = vsel %vm307, %v234, %v246
      %v334 = vsel %vm307, %v256, %v268
      %v338 = vsel %vm307, %v257, %v269
      %v342 = vsel %vm307, %v258, %v270
      %v346 = vsel %vm307, %v280, %v292
      %v350 = vsel %vm307, %v281, %v293
      %v354 = vsel %vm307, %v282, %v294
      %v356 = vld [vmem:[%s1] sm:$0xf]
      %vm357 = vcmask 588800
      %v359 = vsel %vm357, %v356, 0
      %v362 = vsel %vm307, %v304, 0
      %v365 = vsel %vm307, %v305, 0
      %v368 = vsel %vm307, %v306, 0
      %370 = vmatprep.subr.bf16.mxu0 %v314
      %371 = vmatpush1.bf16.msra.mxu0 %v310
      %372 = vmatprep.subr.bf16.mxu0 %v326
      %373 = vmatpush1.bf16.msra.mxu0 %v322
      %374 = vmatprep.subr.bf16.mxu0 %v338
      %375 = vmatpush1.bf16.msra.mxu0 %v334
      %376 = vmatprep.subr.bf16.mxu0 %v350
      %377 = vmatpush1.bf16.msra.mxu0 %v346
      %378 = vmatprep.subr.bf16.mxu0 %v365
      %379 = vmatpush1.bf16.msra.mxu0 %v362
      %380 = vmatprep.subr.bf16.mxu0 0
      %381 = vmatpush1.bf16.msra.mxu0 0
      %382 = vmatprep.subr.bf16.mxu0 0
      %383 = vmatpush1.bf16.msra.mxu0 0
      %384 = vmatprep.subr.bf16.mxu0 0
      %385 = vmatpush1.bf16.msra.mxu0 0
      %386 = vmatprep.subr.bf16.mxu0 0
      %387 = vmatpush1.bf16.msra.mxu0 0
      %388 = vmatprep.subr.bf16.mxu0 0
      %389 = vmatpush1.bf16.msra.mxu0 0
      %390 = vmatprep.subr.bf16.mxu0 0
      %391 = vmatpush1.bf16.msra.mxu0 0
      %392 = vmatprep.subr.bf16.mxu0 0
      %393 = vmatpush1.bf16.msra.mxu0 0
      %394 = vmatprep.subr.bf16.mxu0 0
      %395 = vmatpush1.bf16.msra.mxu0 0
      %396 = vmatprep.subr.bf16.mxu0 0
      %397 = vmatpush1.bf16.msra.mxu0 0
      %398 = vmatprep.subr.bf16.mxu0 0
      %399 = vmatpush1.bf16.msra.mxu0 0
      %400 = vmatprep.subr.bf16.mxu0 0
      %401 = vmatpush1.bf16.msra.mxu0 0
      %402 = vmatprep.mubr.bf16.mxu0 0
      %403 = vmatmul.mubr.bf16.gmra.mrb[0].mxu0 %v359
      %v404 = vpop.f32.mrb[0].mxu0
      %v405 = vadd.f32 0.0, %v404
      %v406 = vpop.f32.mrb[0].mxu0
      %v407 = vadd.f32 0.0, %v406
      %v408 = vpop.f32.mrb[0].mxu0
      %v409 = vpop.f32.mrb[0].mxu0
      %410 = vdwg.mxu0
      %411 = vmatprep.subr.bf16.mxu0 0
      %412 = vmatpush1.bf16.msra.mxu0 %v318
      %413 = vmatprep.subr.bf16.mxu0 0
      %414 = vmatpush1.bf16.msra.mxu0 %v330
      %415 = vmatprep.subr.bf16.mxu0 0
      %416 = vmatpush1.bf16.msra.mxu0 %v342
      %417 = vmatprep.subr.bf16.mxu0 0
      %418 = vmatpush1.bf16.msra.mxu0 %v354
      %419 = vmatprep.subr.bf16.mxu0 0
      %420 = vmatpush1.bf16.msra.mxu0 %v368
      %421 = vmatprep.subr.bf16.mxu0 0
      %422 = vmatpush1.bf16.msra.mxu0 0
      %423 = vmatprep.subr.bf16.mxu0 0
      %424 = vmatpush1.bf16.msra.mxu0 0
      %425 = vmatprep.subr.bf16.mxu0 0
      %426 = vmatpush1.bf16.msra.mxu0 0
      %427 = vmatprep.subr.bf16.mxu0 0
      %428 = vmatpush1.bf16.msra.mxu0 0
      %429 = vmatprep.subr.bf16.mxu0 0
      %430 = vmatpush1.bf16.msra.mxu0 0
      %431 = vmatprep.subr.bf16.mxu0 0
      %432 = vmatpush1.bf16.msra.mxu0 0
      %433 = vmatprep.subr.bf16.mxu0 0
      %434 = vmatpush1.bf16.msra.mxu0 0
      %435 = vmatprep.subr.bf16.mxu0 0
      %436 = vmatpush1.bf16.msra.mxu0 0
      %437 = vmatprep.subr.bf16.mxu0 0
      %438 = vmatpush1.bf16.msra.mxu0 0
      %439 = vmatprep.subr.bf16.mxu0 0
      %440 = vmatpush1.bf16.msra.mxu0 0
      %441 = vmatprep.subr.bf16.mxu0 0
      %442 = vmatpush1.bf16.msra.mxu0 0
      %443 = vmatprep.mubr.bf16.mxu0 0
      %444 = vmatmul.mubr.bf16.gmra.mrb[0].mxu0 %v359
      %v445 = vpop.f32.mrb[0].mxu0
      %v446 = vadd.f32 0.0, %v445
      %v447 = vpop.f32.mrb[0].mxu0
      %v448 = vpop.f32.mrb[0].mxu0
      %v449 = vpop.f32.mrb[0].mxu0
      %450 = vdwg.mxu0
      %v451 = vld [vmem:[%s2] sm:$0xff]
      %453 = vset.pattern.permute.xlu0 0
      %454 = vperm.xlu0 %453, %v451
      %v455 = vpop.permute.xlu0 %454
      %v457 = vmul.f32 %v405, %v455
      %v458 = vmul.f32 %v407, %v455
      %v459 = vmul.f32 %v446, %v455
      %v460 = vld [vmem:[%s3] sm:$0xff]
      %462 = vset.pattern.permute.xlu0 0
      %463 = vperm.xlu0 %462, %v460
      %v464 = vpop.permute.xlu0 %463
      %v466 = vadd.f32 %v457, %v464
      %v467 = vadd.f32 %v458, %v464
      %v468 = vadd.f32 %v459, %v464
      %v469 = vmax.f32 %v466, 0.0
      %v470 = vmax.f32 %v467, 0.0
      %v471 = vmax.f32 %v468, 0.0
      %v472 = vpack.c.bf16 %v469, %v469
      %v473 = vpack.c.bf16 %v470, %v470
      %v474 = vpack.c.bf16 %v471, %v471
      %v478 = vunpack.c.l.b16 %v472
      %v479 = vunpack.c.l.b16 %v473
      %v480 = vunpack.c.l.b16 %v474
      %v481 = vpack.c.b16 %v479, %v478
      %v482 = vpack.c.b16 %v480, %v480
      %485 = vst [vmem:[%s197] sm:$0xff] %v481
      %486 = vst [vmem:[%s197 + $0x8] sm:$0xf] %v482
      %p487 = scmp.lt.s32.totalorder %s15, 1
      %s488 = scalar_select %p487, %s15, 1
      %s489 = smul.addr %s488, 3
      %s490 = smul.addr %s489, 4
      %s491 = scalar_lea.vmem %s4, %s490
      // Predicated region
      $region37: #{conv_bn_relu.3} parent=35 // pred_check
        %p492 = pneg %p122
      $region38: #{conv_bn_relu.3} parent=35 // pred_check_branch
        %494 = sbr.rel (%p492) target = $region40
      $region39: #{conv_bn_relu.3} parent=35 // pred_region
        _
      $region40: #{conv_bn_relu.3} parent=35 // pred_fallthru
        _
    $region36: #{conv_bn_relu.3} parent=5 // pred_fallthru
      _
    %p495 = scmp.le.s32.totalorder 2, %s10
    // Predicated region
    $region41: #{conv_bn_relu.3} parent=5 // pred_check
      %p496 = pneg %p495
    $region42: #{conv_bn_relu.3} parent=5 // pred_check_branch
      %498 = sbr.rel (%p496) target = $region44
    $region43: #{conv_bn_relu.3} parent=5 // pred_region
      %s499 = ssub.s32 %s10, 2
      // Predicated region
      $region45: #{conv_bn_relu.3} parent=43 // pred_check
        %p500 = pneg %p128
      $region46: #{conv_bn_relu.3} parent=43 // pred_check_branch
        %502 = sbr.rel (%p500) target = $region48
      $region47: #{conv_bn_relu.3} parent=43 // pred_region
        %p503 = scmp.lt.s32.totalorder %s16, 1
        %s504 = scalar_select %p503, %s16, 1
        %s505 = smul.addr %s504, 3
        %s506 = smul.addr %s505, 4
        %s507 = scalar_lea.vmem %s4, %s506
      $region48: #{conv_bn_relu.3} parent=43 // pred_fallthru
        _
    $region44: #{conv_bn_relu.3} parent=5 // pred_fallthru
      _
  $region6: #{conv_bn_relu.3} parent=0 // loop_footer
    %s14 = sadd.s32 1, %s10
  $region7: #{conv_bn_relu.3} parent=0 // loop_footer_branch
    %9 = sbr.rel target = $region3
  $region8: #{conv_bn_relu.3} parent=0 // loop_exit
    _

// kernel: conv_bn_relu.2
$region0: #{conv_bn_relu.2}
  #allocation0 [shape = 'u32[]', space=smem, size = 0x4, offset = 0x4, fixed_abs, tag = 'smem constant byte address 0x4 - core index']
  #allocation1 [shape = 'u32[144,128]{1,0:T(1,128)}', space=vmem, size = 0x12000, scoped, tag = 'internal scratch']
  %s0 = inlined_call_operand.vmem [shape: bf16[2,8,512], index: 0, kind: input, shape index: {}]
  %s1 = inlined_call_operand.vmem [shape: bf16[8,72], index: 1, kind: input, shape index: {}]
  %s2 = inlined_call_operand.vmem [shape: bf16[1,384], index: 2, kind: input, shape index: {}]
  %s3 = inlined_call_operand.vmem [shape: f32[16,1], index: 3, kind: output, shape index: {}]
  %s4 = sld [smem:[#allocation0]]
  $region49: #{conv_bn_relu.2} parent=0
    _
  %s6 = ssub.s32 1, %s4
  %s7 = scalar_select 0, %s6, %s4
  loop: start=0, step=1, limit=4
  $region2: #{conv_bn_relu.2} parent=0 // loop_pre_header
    _
  $region3: #{conv_bn_relu.2} parent=0 // loop_header
    %s9 = sphi 0, %s13
    %p10 = scmp.ge.s32.totalorder %s9, 4
    %s19 = sphi 0, %s21
    %s22 = sphi 0, %s19
    %s23 = sphi 0, %s22
    %s39 = sphi 0, %s23
    %s43 = sphi 0, %s43
    %s45 = sphi 0, %s43
    %s46 = sphi 0, %s45
    %s60 = sphi 0, %s46
    %s64 = sphi 0, %s64
    %s66 = sphi 0, %s64
    %s67 = sphi 0, %s66
    %s81 = sphi 0, %s67
    %s85 = sphi 0, %s85
    %s87 = sphi 0, %s85
    %s88 = sphi 0, %s87
    %s102 = sphi 0, %s88
  $region4: #{conv_bn_relu.2} parent=0 // loop_header_branch
    %12 = sbr.rel (%p10) target = $region8
  $region5: #{conv_bn_relu.2} parent=0 // loop_body
    %s14 = ssub.s32 %s9, 1
    %s15 = ssub.s32 %s9, 2
    %s16 = sadd.s32 %s9, 1
    %s17 = ssub.s32 %s9, %s16
    %p18 = scmp.eq.s32.totalorder %s17, 0
    %s20 = sadd.s32 %s19, 1
    %s21 = scalar_select %p18, %s19, %s20
    %p24 = pneg %p18
    %p25 = scmp.eq.s32.totalorder %s9, 1
    %p26 = por %p24, %p25
    %p27 = scmp.ne.s32.totalorder %s19, %s22
    %p28 = scmp.eq.s32.totalorder %s9, 0
    %p29 = por %p27, %p28
    %p30 = scmp.ne.s32.totalorder %s19, %s22
    %p31 = scmp.eq.s32.totalorder %s14, 1
    %p32 = por %p30, %p31
    %p33 = scmp.ne.s32.totalorder %s22, %s23
    %p34 = scmp.eq.s32.totalorder %s14, 0
    %p35 = por %p33, %p34
    %p36 = scmp.ne.s32.totalorder %s22, %s23
    %p37 = scmp.eq.s32.totalorder %s15, 1
    %p38 = por %p36, %p37
    %p40 = scmp.ne.s32.totalorder %s23, %s39
    %p41 = scmp.eq.s32.totalorder %s15, 0
    %p42 = por %p40, %p41
    %s44 = sadd.s32 %s43, 1
    %p47 = scmp.eq.s32.totalorder %s9, 1
    %p48 = scmp.ne.s32.totalorder %s43, %s45
    %p49 = scmp.eq.s32.totalorder %s9, 0
    %p50 = por %p48, %p49
    %p51 = scmp.ne.s32.totalorder %s43, %s45
    %p52 = scmp.eq.s32.totalorder %s14, 1
    %p53 = por %p51, %p52
    %p54 = scmp.ne.s32.totalorder %s45, %s46
    %p55 = scmp.eq.s32.totalorder %s14, 0
    %p56 = por %p54, %p55
    %p57 = scmp.ne.s32.totalorder %s45, %s46
    %p58 = scmp.eq.s32.totalorder %s15, 1
    %p59 = por %p57, %p58
    %p61 = scmp.ne.s32.totalorder %s46, %s60
    %p62 = scmp.eq.s32.totalorder %s15, 0
    %p63 = por %p61, %p62
    %s65 = sadd.s32 %s64, 1
    %p68 = scmp.eq.s32.totalorder %s9, 1
    %p69 = scmp.ne.s32.totalorder %s64, %s66
    %p70 = scmp.eq.s32.totalorder %s9, 0
    %p71 = por %p69, %p70
    %p72 = scmp.ne.s32.totalorder %s64, %s66
    %p73 = scmp.eq.s32.totalorder %s14, 1
    %p74 = por %p72, %p73
    %p75 = scmp.ne.s32.totalorder %s66, %s67
    %p76 = scmp.eq.s32.totalorder %s14, 0
    %p77 = por %p75, %p76
    %p78 = scmp.ne.s32.totalorder %s66, %s67
    %p79 = scmp.eq.s32.totalorder %s15, 1
    %p80 = por %p78, %p79
    %p82 = scmp.ne.s32.totalorder %s67, %s81
    %p83 = scmp.eq.s32.totalorder %s15, 0
    %p84 = por %p82, %p83
    %s86 = sadd.s32 %s85, 1
    %p89 = scmp.eq.s32.totalorder %s9, 1
    %p90 = scmp.ne.s32.totalorder %s85, %s87
    %p91 = scmp.eq.s32.totalorder %s9, 0
    %p92 = por %p90, %p91
    %p93 = scmp.ne.s32.totalorder %s85, %s87
    %p94 = scmp.eq.s32.totalorder %s14, 1
    %p95 = por %p93, %p94
    %p96 = scmp.ne.s32.totalorder %s87, %s88
    %p97 = scmp.eq.s32.totalorder %s14, 0
    %p98 = por %p96, %p97
    %p99 = scmp.ne.s32.totalorder %s87, %s88
    %p100 = scmp.eq.s32.totalorder %s15, 1
    %p101 = por %p99, %p100
    %p103 = scmp.ne.s32.totalorder %s88, %s102
    %p104 = scmp.eq.s32.totalorder %s15, 0
    %p105 = por %p103, %p104
    %p106 = scmp.le.s32.totalorder 1, %s9
    %p107 = scmp.lt.s32.totalorder %s9, 3
    %p108 = pnand %p106, %p107
    %p109 = pneg %p108
    // Predicated region
    $region9: #{conv_bn_relu.2} parent=5 // pred_check
      _
    $region10: #{conv_bn_relu.2} parent=5 // pred_check_branch
      %111 = sbr.rel (%p108) target = $region12
    $region11: #{conv_bn_relu.2} parent=5 // pred_region
      %s112 = ssub.s32 %s9, 1
      // Predicated region
      $region13: #{conv_bn_relu.2} parent=11 // pred_check
        %p113 = pneg %p56
      $region14: #{conv_bn_relu.2} parent=11 // pred_check_branch
        %115 = sbr.rel (%p113) target = $region16
      $region15: #{conv_bn_relu.2} parent=11 // pred_region
        _
      $region16: #{conv_bn_relu.2} parent=11 // pred_fallthru
        _
      // Predicated region
      $region17: #{conv_bn_relu.2} parent=11 // pred_check
        %p116 = pneg %p77
      $region18: #{conv_bn_relu.2} parent=11 // pred_check_branch
        %118 = sbr.rel (%p116) target = $region20
      $region19: #{conv_bn_relu.2} parent=11 // pred_region
        _
      $region20: #{conv_bn_relu.2} parent=11 // pred_fallthru
        _
    $region12: #{conv_bn_relu.2} parent=5 // pred_fallthru
      _
    %p119 = scmp.lt.s32.totalorder %s9, 2
    // Predicated region
    $region21: #{conv_bn_relu.2} parent=5 // pred_check
      %p120 = pneg %p119
    $region22: #{conv_bn_relu.2} parent=5 // pred_check_branch
      %122 = sbr.rel (%p120) target = $region24
    $region23: #{conv_bn_relu.2} parent=5 // pred_region
      // Predicated region
      $region25: #{conv_bn_relu.2} parent=23 // pred_check
        %p123 = pneg %p29
      $region26: #{conv_bn_relu.2} parent=23 // pred_check_branch
        %125 = sbr.rel (%p123) target = $region28
      $region27: #{conv_bn_relu.2} parent=23 // pred_region
        %p126 = scmp.lt.s32.totalorder %s9, 1
        %s127 = scalar_select %p126, %s9, 1
        %s128 = smul.addr %s127, 4
        %s129 = smul.addr %s128, 4
        %s130 = scalar_lea.vmem %s0, %s129
      $region28: #{conv_bn_relu.2} parent=23 // pred_fallthru
        _
    $region24: #{conv_bn_relu.2} parent=5 // pred_fallthru
      _
    %p131 = scmp.le.s32.totalorder 1, %s9
    %p132 = scmp.lt.s32.totalorder %s9, 3
    %p133 = pnand %p131, %p132
    %p134 = pneg %p133
    // Predicated region
    $region29: #{conv_bn_relu.2} parent=5 // pred_check
      _
    $region30: #{conv_bn_relu.2} parent=5 // pred_check_branch
      %136 = sbr.rel (%p133) target = $region32
    $region31: #{conv_bn_relu.2} parent=5 // pred_region
      %s137 = ssub.s32 %s9, 1
      %p138 = scmp.lt.s32.totalorder %s14, 1
      %s139 = scalar_select %p138, %s14, 1
      %s140 = smul.addr %s139, 4
      %s141 = smul.addr %s140, 4
      %s142 = scalar_lea.vmem %s0, %s141
      %p143 = pneg %p35
      %p144 = pneg %p32
      %p145 = pneg %p56
      %p146 = pneg %p53
      %p147 = pneg %p77
      %p148 = pneg %p74
      %p149 = pneg %p98
      %p150 = pneg %p95
      %p151 = scmp.lt.s32.totalorder %s14, 1
      %s152 = scalar_select %p151, %s14, 1
      %s153 = smul.addr %s152, 4
      %s154 = smul.addr %s153, 4
      %s155 = scalar_lea.vmem %s0, %s154
      %v157 = vld [vmem:[%s155] sm:$0xff]
      %v158 = vld [vmem:[%s155 + $0x8] sm:$0xff]
      %v161 = vunpack.c.l.b16 %v157
      %v162 = vunpack.c.h.b16 %v157
      %v163 = vunpack.c.l.b16 %v158
      %v164 = vpack.c.b16 %v161, %v161
      %v165 = vpack.c.b16 %v162, %v162
      %v166 = vpack.c.b16 %v163, %v163
      %v167 = vunpack.c.h.b16 %v158
      %v168 = vpack.c.b16 %v167, %v167
      %169 = vrot.lane.b32.xlu0 %v164, 127
      %v170 = vpop.permute.xlu0 %169
      %171 = vrot.lane.b32.xlu0 %v165, 127
      %v172 = vpop.permute.xlu0 %171
      %173 = vrot.lane.b32.xlu0 %v166, 127
      %v174 = vpop.permute.xlu0 %173
      %175 = vrot.lane.b32.xlu0 %v168, 127
      %v176 = vpop.permute.xlu0 %175
      %vm177 = vcmask 1039360
      %v178 = vsel %vm177, %v170, %v172
      %v179 = vsel %vm177, %v172, %v174
      %v180 = vsel %vm177, %v174, %v176
      %181 = vrot.lane.b32.xlu0 %v164, 126
      %v182 = vpop.permute.xlu0 %181
      %183 = vrot.lane.b32.xlu0 %v165, 126
      %v184 = vpop.permute.xlu0 %183
      %185 = vrot.lane.b32.xlu0 %v166, 126
      %v186 = vpop.permute.xlu0 %185
      %187 = vrot.lane.b32.xlu0 %v168, 126
      %v188 = vpop.permute.xlu0 %187
      %vm189 = vcmask 1031168
      %v190 = vsel %vm189, %v182, %v184
      %v191 = vsel %vm189, %v184, %v186
      %v192 = vsel %vm189, %v186, %v188
      %193 = vrot.lane.b32.xlu0 %v164, 110
      %v194 = vpop.permute.xlu0 %193
      %195 = vrot.lane.b32.xlu0 %v165, 110
      %v196 = vpop.permute.xlu0 %195
      %197 = vrot.lane.b32.xlu0 %v166, 110
      %v198 = vpop.permute.xlu0 %197
      %199 = vrot.lane.b32.xlu0 %v168, 110
      %v200 = vpop.permute.xlu0 %199
      %vm201 = vcmask 900096
      %v202 = vsel %vm201, %v194, %v196
      %v203 = vsel %vm201, %v196, %v198
      %v204 = vsel %vm201, %v198, %v200
      %205 = vrot.lane.b32.xlu0 %v164, 109
      %v206 = vpop.permute.xlu0 %205
      %207 = vrot.lane.b32.xlu0 %v165, 109
      %v208 = vpop.permute.xlu0 %207
      %209 = vrot.lane.b32.xlu0 %v166, 109
      %v210 = vpop.permute.xlu0 %209
      %211 = vrot.lane.b32.xlu0 %v168, 109
      %v212 = vpop.permute.xlu0 %211
      %vm213 = vcmask 891904
      %v214 = vsel %vm213, %v206, %v208
      %v215 = vsel %vm213, %v208, %v210
      %v216 = vsel %vm213, %v210, %v212
      %217 = vrot.lane.b32.xlu0 %v164, 108
      %v218 = vpop.permute.xlu0 %217
      %219 = vrot.lane.b32.xlu0 %v165, 108
      %v220 = vpop.permute.xlu0 %219
      %221 = vrot.lane.b32.xlu0 %v166, 108
      %v222 = vpop.permute.xlu0 %221
      %223 = vrot.lane.b32.xlu0 %v168, 108
      %v224 = vpop.permute.xlu0 %223
      %vm225 = vcmask 883712
      %v226 = vsel %vm225, %v218, %v220
      %v227 = vsel %vm225, %v220, %v222
      %v228 = vsel %vm225, %v222, %v224
      %229 = vrot.lane.b32.xlu0 %v164, 92
      %v230 = vpop.permute.xlu0 %229
      %231 = vrot.lane.b32.xlu0 %v165, 92
      %v232 = vpop.permute.xlu0 %231
      %233 = vrot.lane.b32.xlu0 %v166, 92
      %v234 = vpop.permute.xlu0 %233
      %235 = vrot.lane.b32.xlu0 %v168, 92
      %v236 = vpop.permute.xlu0 %235
      %vm237 = vcmask 752640
      %v238 = vsel %vm237, %v230, %v232
      %v239 = vsel %vm237, %v232, %v234
      %v240 = vsel %vm237, %v234, %v236
      %241 = vrot.lane.b32.xlu0 %v164, 91
      %v242 = vpop.permute.xlu0 %241
      %243 = vrot.lane.b32.xlu0 %v165, 91
      %v244 = vpop.permute.xlu0 %243
      %245 = vrot.lane.b32.xlu0 %v166, 91
      %v246 = vpop.permute.xlu0 %245
      %247 = vrot.lane.b32.xlu0 %v168, 91
      %v248 = vpop.permute.xlu0 %247
      %vm249 = vcmask 744448
      %v250 = vsel %vm249, %v242, %v244
      %v251 = vsel %vm249, %v244, %v246
      %v252 = vsel %vm249, %v246, %v248
      %253 = vrot.lane.b32.xlu0 %v164, 90
      %v254 = vpop.permute.xlu0 %253
      %255 = vrot.lane.b32.xlu0 %v165, 90
      %v256 = vpop.permute.xlu0 %255
      %257 = vrot.lane.b32.xlu0 %v166, 90
      %v258 = vpop.permute.xlu0 %257
      %259 = vrot.lane.b32.xlu0 %v168, 90
      %v260 = vpop.permute.xlu0 %259
      %vm261 = vcmask 736256
      %v262 = vsel %vm261, %v254, %v256
      %v263 = vsel %vm261, %v256, %v258
      %v264 = vsel %vm261, %v258, %v260
      %vm265 = vcmask 1043456
      %v268 = vsel %vm265, %v164, %v178
      %v272 = vsel %vm265, %v165, %v179
      %v276 = vsel %vm265, %v166, %v180
      %v280 = vsel %vm265, %v190, %v202
      %v284 = vsel %vm265, %v191, %v203
      %v288 = vsel %vm265, %v192, %v204
      %v292 = vsel %vm265, %v214, %v226
      %v296 = vsel %vm265, %v215, %v227
      %v300 = vsel %vm265, %v216, %v228
      %v304 = vsel %vm265, %v238, %v250
      %v308 = vsel %vm265, %v239, %v251
      %v312 = vsel %vm265, %v240, %v252
      %v314 = vld [vmem:[%s1] sm:$0xf]
      %vm315 = vcmask 588800
      %v317 = vsel %vm315, %v314, 0
      %v320 = vsel %vm265, %v262, 0
      %v323 = vsel %vm265, %v263, 0
      %v326 = vsel %vm265, %v264, 0
      %328 = vmatprep.subr.bf16.mxu0 %v272
      %329 = vmatpush1.bf16.msra.mxu0 %v268
      %330 = vmatprep.subr.bf16.mxu0 %v284
      %331 = vmatpush1.bf16.msra.mxu0 %v280
      %332 = vmatprep.subr.bf16.mxu0 %v296
      %333 = vmatpush1.bf16.msra.mxu0 %v292
      %334 = vmatprep.subr.bf16.mxu0 %v308
      %335 = vmatpush1.bf16.msra.mxu0 %v304
      %336 = vmatprep.subr.bf16.mxu0 %v323
      %337 = vmatpush1.bf16.msra.mxu0 %v320
      %338 = vmatprep.subr.bf16.mxu0 0
      %339 = vmatpush1.bf16.msra.mxu0 0
      %340 = vmatprep.subr.bf16.mxu0 0
      %341 = vmatpush1.bf16.msra.mxu0 0
      %342 = vmatprep.subr.bf16.mxu0 0
      %343 = vmatpush1.bf16.msra.mxu0 0
      %344 = vmatprep.subr.bf16.mxu0 0
      %345 = vmatpush1.bf16.msra.mxu0 0
      %346 = vmatprep.subr.bf16.mxu0 0
      %347 = vmatpush1.bf16.msra.mxu0 0
      %348 = vmatprep.subr.bf16.mxu0 0
      %349 = vmatpush1.bf16.msra.mxu0 0
      %350 = vmatprep.subr.bf16.mxu0 0
      %351 = vmatpush1.bf16.msra.mxu0 0
      %352 = vmatprep.subr.bf16.mxu0 0
      %353 = vmatpush1.bf16.msra.mxu0 0
      %354 = vmatprep.subr.bf16.mxu0 0
      %355 = vmatpush1.bf16.msra.mxu0 0
      %356 = vmatprep.subr.bf16.mxu0 0
      %357 = vmatpush1.bf16.msra.mxu0 0
      %358 = vmatprep.subr.bf16.mxu0 0
      %359 = vmatpush1.bf16.msra.mxu0 0
      %360 = vmatprep.mubr.bf16.mxu0 0
      %361 = vmatmul.mubr.bf16.gmra.mrb[0].mxu0 %v317
      %v362 = vpop.f32.mrb[0].mxu0
      %v363 = vadd.f32 0.0, %v362
      %v364 = vpop.f32.mrb[0].mxu0
      %v365 = vadd.f32 0.0, %v364
      %v366 = vpop.f32.mrb[0].mxu0
      %v367 = vpop.f32.mrb[0].mxu0
      %368 = vdwg.mxu0
      %369 = vmatprep.subr.bf16.mxu0 0
      %370 = vmatpush1.bf16.msra.mxu0 %v276
      %371 = vmatprep.subr.bf16.mxu0 0
      %372 = vmatpush1.bf16.msra.mxu0 %v288
      %373 = vmatprep.subr.bf16.mxu0 0
      %374 = vmatpush1.bf16.msra.mxu0 %v300
      %375 = vmatprep.subr.bf16.mxu0 0
      %376 = vmatpush1.bf16.msra.mxu0 %v312
      %377 = vmatprep.subr.bf16.mxu0 0
      %378 = vmatpush1.bf16.msra.mxu0 %v326
      %379 = vmatprep.subr.bf16.mxu0 0
      %380 = vmatpush1.bf16.msra.mxu0 0
      %381 = vmatprep.subr.bf16.mxu0 0
      %382 = vmatpush1.bf16.msra.mxu0 0
      %383 = vmatprep.subr.bf16.mxu0 0
      %384 = vmatpush1.bf16.msra.mxu0 0
      %385 = vmatprep.subr.bf16.mxu0 0
      %386 = vmatpush1.bf16.msra.mxu0 0
      %387 = vmatprep.subr.bf16.mxu0 0
      %388 = vmatpush1.bf16.msra.mxu0 0
      %389 = vmatprep.subr.bf16.mxu0 0
      %390 = vmatpush1.bf16.msra.mxu0 0
      %391 = vmatprep.subr.bf16.mxu0 0
      %392 = vmatpush1.bf16.msra.mxu0 0
      %393 = vmatprep.subr.bf16.mxu0 0
      %394 = vmatpush1.bf16.msra.mxu0 0
      %395 = vmatprep.subr.bf16.mxu0 0
      %396 = vmatpush1.bf16.msra.mxu0 0
      %397 = vmatprep.subr.bf16.mxu0 0
      %398 = vmatpush1.bf16.msra.mxu0 0
      %399 = vmatprep.subr.bf16.mxu0 0
      %400 = vmatpush1.bf16.msra.mxu0 0
      %401 = vmatprep.mubr.bf16.mxu0 0
      %402 = vmatmul.mubr.bf16.gmra.mrb[0].mxu0 %v317
      %v403 = vpop.f32.mrb[0].mxu0
      %v404 = vadd.f32 0.0, %v403
      %v405 = vpop.f32.mrb[0].mxu0
      %v406 = vpop.f32.mrb[0].mxu0
      %v407 = vpop.f32.mrb[0].mxu0
      %408 = vdwg.mxu0
      %v409 = vld [vmem:[%s2] sm:$0x7]
      %v410 = vunpack.c.l.bf16 %v409
      %v412 = vlaneseq
      %v413 = vshrl.u32 %v412, 7
      %v414 = vsub.s32 0, %v413
      %v415 = vrot.slane %v410, %v414
      %v416 = vlaneseq
      %v417 = vshrl.u32 %v416, 7
      %v418 = vsub.s32 2, %v417
      %v419 = vrot.slane %v410, %v418
      %v420 = vlaneseq
      %v421 = vshrl.u32 %v420, 7
      %v422 = vsub.s32 4, %v421
      %v423 = vrot.slane %v410, %v422
      %v427 = vlaneseq
      %v428 = vshrl.u32 %v427, 7
      %v429 = vsub.s32 0, %v428
      %v430 = vrot.slane %v415, %v429
      %v431 = vlaneseq
      %v432 = vshrl.u32 %v431, 7
      %v433 = vsub.s32 0, %v432
      %v434 = vrot.slane %v419, %v433
      %v435 = vlaneseq
      %v436 = vshrl.u32 %v435, 7
      %v437 = vsub.s32 0, %v436
      %v438 = vrot.slane %v423, %v437
      %v439 = vmul.f32 %v363, %v430
      %v440 = vmul.f32 %v365, %v434
      %v441 = vmul.f32 %v404, %v438
      %v442 = vmul.f32 %v439, %v363
      %v443 = vmul.f32 %v440, %v365
      %v444 = vmul.f32 %v441, %v404
      %445 = vmatprep.subr.mxu0 0.0
      %446 = vmatpush1.msra.mxu0 1.0
      %447 = vmatprep.subr.mxu0 0.0
      %448 = vmatpush1.msra.mxu0 1.0
      %449 = vmatprep.subr.mxu0 0.0
      %450 = vmatpush1.msra.mxu0 1.0
      %451 = vmatprep.subr.mxu0 0.0
      %452 = vmatpush1.msra.mxu0 1.0
      %453 = vmatprep.subr.mxu0 0.0
      %454 = vmatpush1.msra.mxu0 1.0
      %455 = vmatprep.subr.mxu0 0.0
      %456 = vmatpush1.msra.mxu0 1.0
      %457 = vmatprep.subr.mxu0 0.0
      %458 = vmatpush1.msra.mxu0 1.0
      %459 = vmatprep.subr.mxu0 0.0
      %460 = vmatpush1.msra.mxu0 1.0
      %461 = vmatprep.subr.mxu0 0.0
      %462 = vmatpush1.msra.mxu0 1.0
      %463 = vmatprep.subr.mxu0 0.0
      %464 = vmatpush1.msra.mxu0 1.0
      %465 = vmatprep.subr.mxu0 0.0
      %466 = vmatpush1.msra.mxu0 1.0
      %467 = vmatprep.subr.mxu0 0.0
      %468 = vmatpush1.msra.mxu0 1.0
      %469 = vmatprep.subr.mxu0 0.0
      %470 = vmatpush1.msra.mxu0 1.0
      %471 = vmatprep.subr.mxu0 0.0
      %472 = vmatpush1.msra.mxu0 1.0
      %473 = vmatprep.subr.mxu0 0.0
      %474 = vmatpush1.msra.mxu0 1.0
      %475 = vmatprep.subr.mxu0 0.0
      %476 = vmatpush1.msra.mxu0 1.0
      %477 = vmatprep.subr.mxu0 0.0
      %478 = vmatpush1.msra.mxu0 1.0
      %479 = vmatprep.subr.mxu0 0.0
      %480 = vmatpush1.msra.mxu0 1.0
      %481 = vmatprep.subr.mxu0 0.0
      %482 = vmatpush1.msra.mxu0 1.0
      %483 = vmatprep.subr.mxu0 0.0
      %484 = vmatpush1.msra.mxu0 1.0
      %485 = vmatprep.subr.mxu0 0.0
      %486 = vmatpush1.msra.mxu0 1.0
      %487 = vmatprep.subr.mxu0 0.0
      %488 = vmatpush1.msra.mxu0 1.0
      %489 = vmatprep.subr.mxu0 0.0
      %490 = vmatpush1.msra.mxu0 1.0
      %491 = vmatprep.subr.mxu0 0.0
      %492 = vmatpush1.msra.mxu0 1.0
      %493 = vmatprep.subr.mxu0 0.0
      %494 = vmatpush1.msra.mxu0 1.0
      %495 = vmatprep.subr.mxu0 0.0
      %496 = vmatpush1.msra.mxu0 1.0
      %497 = vmatprep.subr.mxu0 0.0
      %498 = vmatpush1.msra.mxu0 1.0
      %499 = vmatprep.subr.mxu0 0.0
      %500 = vmatpush1.msra.mxu0 1.0
      %501 = vmatprep.subr.mxu0 0.0
      %502 = vmatpush1.msra.mxu0 1.0
      %503 = vmatprep.subr.mxu0 0.0
      %504 = vmatpush1.msra.mxu0 1.0
      %505 = vmatprep.subr.mxu0 0.0
      %506 = vmatpush1.msra.mxu0 1.0
      %507 = vmatprep.subr.mxu0 0.0
      %508 = vmatpush1.msra.mxu0 1.0
      %509 = vmatprep.mubr.f32.mxu0 %v440
      %510 = vmatmul.mubr.f32.gmra.mrb[0].mxu0 %v439
      %v511 = vpop.f32.mrb[0].mxu0
      %v512 = vadd.f32 0.0, %v511
      %v513 = vpop.f32.mrb[0].mxu0
      %514 = vmatprep.mubr.f32.mxu0 %v443
      %515 = vmatmul.mubr.f32.gmra.mrb[0].mxu0 %v442
      %v516 = vpop.f32.mrb[0].mxu0
      %v517 = vadd.f32 0.0, %v516
      %v518 = vpop.f32.mrb[0].mxu0
      %519 = vdwg.mxu0
      %520 = vmatprep.subr.mxu0 0.0
      %521 = vmatpush1.msra.mxu0 1.0
      %522 = vmatprep.subr.mxu0 0.0
      %523 = vmatpush1.msra.mxu0 1.0
      %524 = vmatprep.subr.mxu0 0.0
      %525 = vmatpush1.msra.mxu0 1.0
      %526 = vmatprep.subr.mxu0 0.0
      %527 = vmatpush1.msra.mxu0 1.0
      %528 = vmatprep.subr.mxu0 0.0
      %529 = vmatpush1.msra.mxu0 1.0
      %530 = vmatprep.subr.mxu0 0.0
      %531 = vmatpush1.msra.mxu0 1.0
      %532 = vmatprep.subr.mxu0 0.0
      %533 = vmatpush1.msra.mxu0 1.0
      %534 = vmatprep.subr.mxu0 0.0
      %535 = vmatpush1.msra.mxu0 1.0
      %536 = vmatprep.subr.mxu0 0.0
      %537 = vmatpush1.msra.mxu0 1.0
      %538 = vmatprep.subr.mxu0 0.0
      %539 = vmatpush1.msra.mxu0 1.0
      %540 = vmatprep.subr.mxu0 0.0
      %541 = vmatpush1.msra.mxu0 1.0
      %542 = vmatprep.subr.mxu0 0.0
      %543 = vmatpush1.msra.mxu0 1.0
      %544 = vmatprep.subr.mxu0 0.0
      %545 = vmatpush1.msra.mxu0 1.0
      %546 = vmatprep.subr.mxu0 0.0
      %547 = vmatpush1.msra.mxu0 1.0
      %548 = vmatprep.subr.mxu0 0.0
      %549 = vmatpush1.msra.mxu0 1.0
      %550 = vmatprep.subr.mxu0 0.0
      %551 = vmatpush1.msra.mxu0 1.0
      %552 = vmatprep.subr.mxu0 0.0
      %553 = vmatpush1.msra.mxu0 0.0
      %554 = vmatprep.subr.mxu0 0.0
      %555 = vmatpush1.msra.mxu0 0.0
      %556 = vmatprep.subr.mxu0 0.0
      %557 = vmatpush1.msra.mxu0 0.0
      %558 = vmatprep.subr.mxu0 0.0
      %559 = vmatpush1.msra.mxu0 0.0
      %560 = vmatprep.subr.mxu0 0.0
      %561 = vmatpush1.msra.mxu0 0.0
      %562 = vmatprep.subr.mxu0 0.0
      %563 = vmatpush1.msra.mxu0 0.0
      %564 = vmatprep.subr.mxu0 0.0
      %565 = vmatpush1.msra.mxu0 0.0
      %566 = vmatprep.subr.mxu0 0.0
      %567 = vmatpush1.msra.mxu0 0.0
      %568 = vmatprep.subr.mxu0 0.0
      %569 = vmatpush1.msra.mxu0 0.0
      %570 = vmatprep.subr.mxu0 0.0
      %571 = vmatpush1.msra.mxu0 0.0
      %572 = vmatprep.subr.mxu0 0.0
      %573 = vmatpush1.msra.mxu0 0.0
      %574 = vmatprep.subr.mxu0 0.0
      %575 = vmatpush1.msra.mxu0 0.0
      %576 = vmatprep.subr.mxu0 0.0
      %577 = vmatpush1.msra.mxu0 0.0
      %578 = vmatprep.subr.mxu0 0.0
      %579 = vmatpush1.msra.mxu0 0.0
      %580 = vmatprep.subr.mxu0 0.0
      %581 = vmatpush1.msra.mxu0 0.0
      %582 = vmatprep.subr.mxu0 0.0
      %583 = vmatpush1.msra.mxu0 0.0
      %584 = vmatprep.mubr.f32.mxu0 0.0
      %585 = vmatmul.mubr.f32.gmra.mrb[0].mxu0 %v441
      %v586 = vpop.f32.mrb[0].mxu0
      %v587 = vadd.f32 %v512, %v586
      %v588 = vpop.f32.mrb[0].mxu0
      %589 = vmatprep.mubr.f32.mxu0 0.0
      %590 = vmatmul.mubr.f32.gmra.mrb[0].mxu0 %v444
      %v591 = vpop.f32.mrb[0].mxu0
      %v592 = vadd.f32 %v517, %v591
      %v593 = vpop.f32.mrb[0].mxu0
      %594 = vdwg.mxu0
      %p595 = scmp.eq.s32.totalorder %s14, 0
      // Predicated region
      $region33: #{conv_bn_relu.2} parent=31 // pred_check
        %p596 = pneg %p595
      $region34: #{conv_bn_relu.2} parent=31 // pred_check_branch
        %598 = sbr.rel (%p596) target = $region36
      $region35: #{conv_bn_relu.2} parent=31 // pred_region
        %vm599 = vcmask 7168
        %600 = vst.msk [vmem:[%s3] sm:$0xff] %vm599, 0.0
        %601 = vst.msk [vmem:[%s3 + $0x8] sm:$0xff] %vm599, 0.0
      $region36: #{conv_bn_relu.2} parent=31 // pred_fallthru
        _
      %v602 = vld [vmem:[%s3] sm:$0xff]
      %v603 = vld [vmem:[%s3 + $0x8] sm:$0xff]
      %v604 = vadd.f32 %v602, %v587
      %v605 = vadd.f32 %v603, %v592
      %vm606 = vcmask 7168
      %607 = vst.msk [vmem:[%s3] sm:$0xff] %vm606, %v604
      %608 = vst.msk [vmem:[%s3 + $0x8] sm:$0xff] %vm606, %v605
      // Predicated region
      $region37: #{conv_bn_relu.2} parent=31 // pred_check
        %p609 = pneg %p95
      $region38: #{conv_bn_relu.2} parent=31 // pred_check_branch
        %611 = sbr.rel (%p609) target = $region40
      $region39: #{conv_bn_relu.2} parent=31 // pred_region
        _
      $region40: #{conv_bn_relu.2} parent=31 // pred_fallthru
        _
      // Predicated region
      $region41: #{conv_bn_relu.2} parent=31 // pred_check
        %p612 = pneg %p95
      $region42: #{conv_bn_relu.2} parent=31 // pred_check_branch
        %614 = sbr.rel (%p612) target = $region44
      $region43: #{conv_bn_relu.2} parent=31 // pred_region
        _
      $region44: #{conv_bn_relu.2} parent=31 // pred_fallthru
        _
    $region32: #{conv_bn_relu.2} parent=5 // pred_fallthru
      _
    %p615 = scmp.le.s32.totalorder 2, %s9
    // Predicated region
    $region45: #{conv_bn_relu.2} parent=5 // pred_check
      %p616 = pneg %p615
    $region46: #{conv_bn_relu.2} parent=5 // pred_check_branch
      %618 = sbr.rel (%p616) target = $region48
    $region47: #{conv_bn_relu.2} parent=5 // pred_region
      %s619 = ssub.s32 %s9, 2
    $region48: #{conv_bn_relu.2} parent=5 // pred_fallthru
      _
  $region6: #{conv_bn_relu.2} parent=0 // loop_footer
    %s13 = sadd.s32 1, %s9
  $region7: #{conv_bn_relu.2} parent=0 // loop_footer_branch
    %8 = sbr.rel target = $region3
  $region8: #{conv_bn_relu.2} parent=0 // loop_exit
    _

</llo_original>
